<compile_context>
chip_gen: v6e
topology: v6e:2x2x1
jax: 0.10.0
libtpu: 0.0.40
codegen_flags: <defaults>
</compile_context>

<pallas_src>
import jax
import jax.numpy as jnp
import numpy as np
from jax.experimental import pallas as pl
from jax.experimental.pallas import tpu as pltpu  # noqa: F401  (TPU backend assumed)


KP = 8  # the 3 conv taps padded to 8 for a clean, aligned MXU contraction dim


# ---------------------------------------------------------------------------
# Single fused MoE kernel: all experts + gate-weighted combine in one shot.
# ---------------------------------------------------------------------------
def moe_fused_kernel(xs_ref, pool_ref, gates_ref, grep_ref,
                     cw_ref, cb_ref, fw_ref, fb_ref, y_ref):
    """Fused expert compute + combine (no grid: one invocation, one DMA/operand).

    xs_ref   : [B*D, KP]   im2col of the 3-tap padding=1 conv (taps zero-padded to KP)
    pool_ref : [B,   B*D]  block-diagonal mean-pool matrix (1/D on row b, cols b*D..)
    gates_ref: [B,   E]    sparse top-k gates
    grep_ref : [B,   E*H]  gates repeated over each expert's hidden axis
    cw_ref   : [KP,  E*H]  all experts' conv taps, lane-stacked
    cb_ref   : [1,   E*H]  all experts' conv biases
    fw_ref   : [E*H, O]    all experts' fc weights, row-stacked
    fb_ref   : [E,   O]    all experts' fc biases
    y_ref    : [B,   O]    gate-weighted combined output
    """
    # Conv1d(1, H, 3, padding=1) for EVERY expert at once, lane-dense [B*D, E*H].
    conv = jnp.dot(xs_ref[...], cw_ref[...],
                   preferred_element_type=jnp.float32) + cb_ref[...]
    act = jnp.maximum(conv, 0.0)                                  # ReLU

    # AdaptiveAvgPool1d(1) over the length axis for all experts (one MXU matmul).
    pooled = jnp.dot(pool_ref[...], act,
                     preferred_element_type=jnp.float32)          # [B, E*H]

    # Gate-weight the pooled features, then the stacked Linear + gated bias gives
    #   y[b] = sum_e gates[b,e] * (pooled_e[b] @ fc_w[e] + fc_b[e])
    gp = grep_ref[...] * pooled                                   # [B, E*H]
    y = jnp.dot(gp, fw_ref[...], preferred_element_type=jnp.float32)
    y = y + jnp.dot(gates_ref[...], fb_ref[...],
                    preferred_element_type=jnp.float32)
    # NOTE: y is [B, O] = [8, 8]; a single (masked) store, negligible here.
    y_ref[...] = y


def moe_combine(x, gates, conv_w, conv_b, fc_w, fc_b):
    """Wrapper: pure layout plumbing (im2col / stacking), then one pallas_call."""
    B, D = x.shape
    E, _, H = conv_w.shape
    O = fc_w.shape[2]

    # im2col of the 3-tap, padding=1 conv: xs[b*D+l, k] = xpad[b, l+k]
    xpad = jnp.pad(x, ((0, 0), (1, 1)))
    xs = jnp.stack([xpad[:, k:k + D] for k in range(3)], axis=-1)   # [B, D, 3]
    xs = xs.reshape(B * D, 3)
    xs = jnp.pad(xs, ((0, 0), (0, KP - 3)))                         # [B*D, KP]

    # Block-diagonal mean-pool matrix: pool[b, b*D + l] = 1/D.
    pool = jnp.repeat(jnp.eye(B, dtype=jnp.float32), D, axis=1) / D  # [B, B*D]

    # Gates broadcast over each expert's hidden channels.
    grep = jnp.repeat(gates, H, axis=1)                              # [B, E*H]

    # Stack all expert parameters into lane-dense slabs (one DMA per operand).
    cw = jnp.transpose(conv_w, (1, 0, 2)).reshape(3, E * H)          # [3, E*H]
    cw = jnp.pad(cw, ((0, KP - 3), (0, 0)))                          # [KP, E*H]
    cb = conv_b.reshape(1, E * H)                                    # [1, E*H]
    fw = fc_w.reshape(E * H, O)                                      # [E*H, O]
    fb = fc_b.reshape(E, O)                                          # [E, O]

    return pl.pallas_call(
        moe_fused_kernel,
        out_shape=jax.ShapeDtypeStruct((B, O), jnp.float32),
        # No grid / BlockSpecs: whole (tiny) arrays are staged in VMEM once.
    )(xs, pool, gates, grep, cw, cb, fw, fb)


# ---------------------------------------------------------------------------
# Gating (eval path of noisy_top_k_gating) + cv_squared load-balancing loss.
# Kept in plain jnp so XLA fuses logits -> softmax -> top-k (review item 1).
# ---------------------------------------------------------------------------
def cv_squared(v):
    eps = 1e-10
    if v.shape[0] == 1:
        return jnp.zeros((), jnp.float32)
    v = v.astype(jnp.float32)
    return jnp.var(v, ddof=1) / (jnp.mean(v) ** 2 + eps)   # torch.var is unbiased


def moe_forward(x, params, k=3, loss_coef=0.01):
    w_gate = params["w_gate"]
    B = x.shape[0]
    E = w_gate.shape[1]

    clean_logits = x @ w_gate                      # tiny matmul; XLA-fused
    probs = jax.nn.softmax(clean_logits, axis=1)   # Softmax(1)

    kk = min(k + 1, E)
    top_logits, top_idx = jax.lax.top_k(probs, kk)
    top_k_logits = top_logits[:, :k]
    top_k_idx = top_idx[:, :k]
    top_k_gates = top_k_logits / (jnp.sum(top_k_logits, axis=1, keepdims=True) + 1e-6)
    gates = jnp.zeros_like(probs).at[
        jnp.arange(B)[:, None], top_k_idx].set(top_k_gates)

    load = jnp.sum((gates > 0).astype(jnp.float32), axis=0)
    importance = jnp.sum(gates, axis=0)
    loss = (cv_squared(importance) + cv_squared(load)) * loss_coef

    y = moe_combine(x, gates, params["conv_w"], params["conv_b"],
                    params["fc_w"], params["fc_b"])   # fused Pallas kernel
    return y, loss


# ---------------------------------------------------------------------------
# Pure-JAX reference (for self-check).
# ---------------------------------------------------------------------------
def expert_ref(x, cw, cb, fw, fb):
    B, D = x.shape
    H = cw.shape[1]
    xpad = jnp.pad(x, ((0, 0), (1, 1)))
    conv = cb.reshape(1, H, 1)
    for k in range(3):
        conv = conv + cw[k][None, :, None] * xpad[:, k:k + D][:, None, :]
    pooled = jnp.mean(jnp.maximum(conv, 0.0), axis=-1)
    return pooled @ fw + fb.reshape(1, -1)


if __name__ == "__main__":
    B, D, E, H, O, K = 8, 32, 8, 32, 8, 3

    key = jax.random.PRNGKey(0)
    kx, kg, kcw, kcb, kfw, kfb = jax.random.split(key, 6)

    x = jax.random.normal(kx, (B, D), jnp.float32)
    params = dict(
        # PyTorch inits w_gate to zeros; a small random init is used here so the
        # top-k routing is non-degenerate (still deterministic via PRNGKey(0)).
        w_gate=0.1 * jax.random.normal(kg, (D, E), jnp.float32),
        conv_w=0.2 * jax.random.normal(kcw, (E, 3, H), jnp.float32),
        conv_b=0.1 * jax.random.normal(kcb, (E, H), jnp.float32),
        fc_w=0.2 * jax.random.normal(kfw, (E, H, O), jnp.float32),
        fc_b=0.1 * jax.random.normal(kfb, (E, O), jnp.float32),
    )

    y, loss = jax.jit(moe_forward, static_argnames=("k",))(x, params, k=K)
    jax.block_until_ready((y, loss))

    # Self-check against a pure-JAX dense reference using the same gates.
    clean_logits = x @ params["w_gate"]
    probs = jax.nn.softmax(clean_logits, axis=1)
    tl, ti = jax.lax.top_k(probs, min(K + 1, E))
    tkl, tki = tl[:, :K], ti[:, :K]
    tkg = tkl / (jnp.sum(tkl, axis=1, keepdims=True) + 1e-6)
    gates = jnp.zeros_like(probs).at[jnp.arange(B)[:, None], tki].set(tkg)
    y_ref = jnp.zeros((B, O), jnp.float32)
    for e in range(E):
        oe = expert_ref(x, params["conv_w"][e], params["conv_b"][e],
                        params["fc_w"][e], params["fc_b"][e])
        y_ref = y_ref + gates[:, e:e + 1] * oe

    np.testing.assert_allclose(np.asarray(y), np.asarray(y_ref),
                               rtol=1e-4, atol=1e-4)
    print("KERNEL_OK")
</pallas_src>

<mosaic_0001>
module attributes {stable_mosaic.version = 11 : i64} {
  func.func @moe_fused_kernel(%arg0: memref<256x8xf32, #tpu.memory_space<vmem>>, %arg1: memref<8x256xf32, #tpu.memory_space<vmem>>, %arg2: memref<8x8xf32, #tpu.memory_space<vmem>>, %arg3: memref<8x256xf32, #tpu.memory_space<vmem>>, %arg4: memref<8x256xf32, #tpu.memory_space<vmem>>, %arg5: memref<1x256xf32, #tpu.memory_space<vmem>>, %arg6: memref<256x8xf32, #tpu.memory_space<vmem>>, %arg7: memref<8x8xf32, #tpu.memory_space<vmem>>, %arg8: memref<8x8xf32, #tpu.memory_space<vmem>>) attributes {dimension_semantics = [], scalar_prefetch = 0 : i64, scratch_operands = 0 : i64, tpu.core_type = #tpu.core_type<tc>} {
    %c0 = arith.constant 0 : index
    %c0_0 = arith.constant 0 : index
    %0 = vector.load %arg0[%c0, %c0_0] : memref<256x8xf32, #tpu.memory_space<vmem>>, vector<256x8xf32>
    %c0_1 = arith.constant 0 : index
    %c0_2 = arith.constant 0 : index
    %1 = vector.load %arg4[%c0_1, %c0_2] : memref<8x256xf32, #tpu.memory_space<vmem>>, vector<8x256xf32>
    %cst = arith.constant dense<0.000000e+00> : vector<256x256xf32>
    %2 = tpu.matmul %0, %1, %cst {dimension_numbers = #tpu.dot_dimension_numbers<[1], [0], [0], [1], [0, 0, 1, 1], [], []>} : vector<256x8xf32>, vector<8x256xf32>, vector<256x256xf32> -> vector<256x256xf32>
    %c0_3 = arith.constant 0 : index
    %c0_4 = arith.constant 0 : index
    %3 = vector.load %arg5[%c0_3, %c0_4] : memref<1x256xf32, #tpu.memory_space<vmem>>, vector<1x256xf32>
    %4 = vector.broadcast %3 : vector<1x256xf32> to vector<256x256xf32>
    %5 = arith.addf %2, %4 : vector<256x256xf32>
    %cst_5 = arith.constant 0.000000e+00 : f32
    %6 = vector.broadcast %cst_5 : f32 to vector<256x256xf32>
    %7 = arith.maximumf %5, %6 : vector<256x256xf32>
    %c0_6 = arith.constant 0 : index
    %c0_7 = arith.constant 0 : index
    %8 = vector.load %arg1[%c0_6, %c0_7] : memref<8x256xf32, #tpu.memory_space<vmem>>, vector<8x256xf32>
    %cst_8 = arith.constant dense<0.000000e+00> : vector<8x256xf32>
    %9 = tpu.matmul %8, %7, %cst_8 {dimension_numbers = #tpu.dot_dimension_numbers<[1], [0], [0], [1], [0, 0, 1, 1], [], []>} : vector<8x256xf32>, vector<256x256xf32>, vector<8x256xf32> -> vector<8x256xf32>
    %c0_9 = arith.constant 0 : index
    %c0_10 = arith.constant 0 : index
    %10 = vector.load %arg3[%c0_9, %c0_10] : memref<8x256xf32, #tpu.memory_space<vmem>>, vector<8x256xf32>
    %11 = arith.mulf %10, %9 : vector<8x256xf32>
    %c0_11 = arith.constant 0 : index
    %c0_12 = arith.constant 0 : index
    %12 = vector.load %arg6[%c0_11, %c0_12] : memref<256x8xf32, #tpu.memory_space<vmem>>, vector<256x8xf32>
    %cst_13 = arith.constant dense<0.000000e+00> : vector<8x8xf32>
    %13 = tpu.matmul %11, %12, %cst_13 {dimension_numbers = #tpu.dot_dimension_numbers<[1], [0], [0], [1], [0, 0, 1, 1], [], []>} : vector<8x256xf32>, vector<256x8xf32>, vector<8x8xf32> -> vector<8x8xf32>
    %c0_14 = arith.constant 0 : index
    %c0_15 = arith.constant 0 : index
    %14 = vector.load %arg2[%c0_14, %c0_15] : memref<8x8xf32, #tpu.memory_space<vmem>>, vector<8x8xf32>
    %c0_16 = arith.constant 0 : index
    %c0_17 = arith.constant 0 : index
    %15 = vector.load %arg7[%c0_16, %c0_17] : memref<8x8xf32, #tpu.memory_space<vmem>>, vector<8x8xf32>
    %cst_18 = arith.constant dense<0.000000e+00> : vector<8x8xf32>
    %16 = tpu.matmul %14, %15, %cst_18 {dimension_numbers = #tpu.dot_dimension_numbers<[1], [0], [0], [1], [0, 0, 1, 1], [], []>} : vector<8x8xf32>, vector<8x8xf32>, vector<8x8xf32> -> vector<8x8xf32>
    %17 = arith.addf %13, %16 : vector<8x8xf32>
    %c0_19 = arith.constant 0 : index
    %c0_20 = arith.constant 0 : index
    %18 = vector.load %arg8[%c0_19, %c0_20] : memref<8x8xf32, #tpu.memory_space<vmem>>, vector<8x8xf32>
    tpu.vector_store %arg8[%c0_19, %c0_20], %17 {strides = array<i32>} : memref<8x8xf32, #tpu.memory_space<vmem>>, vector<8x8xf32>,
    return
  }
}

</mosaic_0001>

<llo_original>
// kernel: moe_forward.1
$region0: #{moe_forward.1}
  #allocation0 [shape = 'u32[]', space=smem, size = 0x4, offset = 0x4, fixed_abs, tag = 'smem constant byte address 0x4 - core index']
  #allocation1 [shape = 'u32[144,128]{1,0:T(1,128)}', space=vmem, size = 0x12000, scoped, tag = 'internal scratch']
  %s0 = inlined_call_operand.vmem [shape: f32[256,8], index: 0, kind: input, shape index: {}]
  %s1 = inlined_call_operand.vmem [shape: f32[8,256], index: 1, kind: input, shape index: {}]
  %s2 = inlined_call_operand.vmem [shape: f32[8,8], index: 2, kind: input, shape index: {}]
  %s3 = inlined_call_operand.vmem [shape: f32[8,256], index: 3, kind: input, shape index: {}]
  %s4 = inlined_call_operand.vmem [shape: f32[8,256], index: 4, kind: input, shape index: {}]
  %s5 = inlined_call_operand.vmem [shape: f32[1,256], index: 5, kind: input, shape index: {}]
  %s6 = inlined_call_operand.vmem [shape: f32[256,8], index: 6, kind: input, shape index: {}]
  %s7 = inlined_call_operand.vmem [shape: f32[8,8], index: 7, kind: input, shape index: {}]
  %s8 = inlined_call_operand.hbm [shape: f32[8,8], index: 8, kind: output, shape index: {}]
  %s9 = sld [smem:[#allocation0]]
  $region42: #{moe_forward.1} parent=0
    _
  %s11 = ssub.s32 1, %s9
  %s12 = scalar_select 0, %s11, %s9
  $region1: #{moe_forward.1} parent=0
    #allocation2 [shape = 'u8[4096]{0}', space=vmem, size = 0x1000, scoped, tag = 'output window, operand 0, single buffered']
    #allocation3 [shape = 's32[1]{0}', space=sflag, size = 0x4, scoped, tag = 'scoped memory for moe_forward.1']
    %13 = vsyncpa [#allocation3], 0
    // Predicated region
    $region2: #{moe_forward.1} parent=1 // pred_check
      _
    $region3: #{moe_forward.1} parent=1 // pred_check_branch
      %15 = sbr.rel (0) target = $region5
    $region4: #{moe_forward.1} parent=1 // pred_region
      _
    $region5: #{moe_forward.1} parent=1 // pred_fallthru
      _
    // Predicated region
    $region6: #{moe_forward.1} parent=1 // pred_check
      _
    $region7: #{moe_forward.1} parent=1 // pred_check_branch
      %17 = sbr.rel (0) target = $region9
    $region8: #{moe_forward.1} parent=1 // pred_region
      _
    $region9: #{moe_forward.1} parent=1 // pred_fallthru
      _
    // Predicated region
    $region10: #{moe_forward.1} parent=1 // pred_check
      _
    $region11: #{moe_forward.1} parent=1 // pred_check_branch
      %19 = sbr.rel (0) target = $region13
    $region12: #{moe_forward.1} parent=1 // pred_region
      _
    $region13: #{moe_forward.1} parent=1 // pred_fallthru
      _
    // Predicated region
    $region14: #{moe_forward.1} parent=1 // pred_check
      _
    $region15: #{moe_forward.1} parent=1 // pred_check_branch
      %21 = sbr.rel (0) target = $region17
    $region16: #{moe_forward.1} parent=1 // pred_region
      _
    $region17: #{moe_forward.1} parent=1 // pred_fallthru
      _
    // Predicated region
    $region18: #{moe_forward.1} parent=1 // pred_check
      _
    $region19: #{moe_forward.1} parent=1 // pred_check_branch
      %23 = sbr.rel (0) target = $region21
    $region20: #{moe_forward.1} parent=1 // pred_region
      _
    $region21: #{moe_forward.1} parent=1 // pred_fallthru
      _
    // Predicated region
    $region22: #{moe_forward.1} parent=1 // pred_check
      _
    $region23: #{moe_forward.1} parent=1 // pred_check_branch
      %25 = sbr.rel (0) target = $region25
    $region24: #{moe_forward.1} parent=1 // pred_region
      _
    $region25: #{moe_forward.1} parent=1 // pred_fallthru
      _
    // Predicated region
    $region26: #{moe_forward.1} parent=1 // pred_check
      _
    $region27: #{moe_forward.1} parent=1 // pred_check_branch
      %27 = sbr.rel (0) target = $region29
    $region28: #{moe_forward.1} parent=1 // pred_region
      _
    $region29: #{moe_forward.1} parent=1 // pred_fallthru
      _
    // Predicated region
    $region30: #{moe_forward.1} parent=1 // pred_check
      _
    $region31: #{moe_forward.1} parent=1 // pred_check_branch
      %29 = sbr.rel (0) target = $region33
    $region32: #{moe_forward.1} parent=1 // pred_region
      _
    $region33: #{moe_forward.1} parent=1 // pred_fallthru
      _
    %v30 = vld [vmem:[%s0] sm:$0xff]
    %v31 = vld [vmem:[%s0 + $0x8] sm:$0xff]
    %v32 = vld [vmem:[%s0 + $0x10] sm:$0xff]
    %v33 = vld [vmem:[%s0 + $0x18] sm:$0xff]
    %v34 = vld [vmem:[%s0 + $0x20] sm:$0xff]
    %v35 = vld [vmem:[%s0 + $0x28] sm:$0xff]
    %v36 = vld [vmem:[%s0 + $0x30] sm:$0xff]
    %v37 = vld [vmem:[%s0 + $0x38] sm:$0xff]
    %v38 = vld [vmem:[%s0 + $0x40] sm:$0xff]
    %v39 = vld [vmem:[%s0 + $0x48] sm:$0xff]
    %v40 = vld [vmem:[%s0 + $0x50] sm:$0xff]
    %v41 = vld [vmem:[%s0 + $0x58] sm:$0xff]
    %v42 = vld [vmem:[%s0 + $0x60] sm:$0xff]
    %v43 = vld [vmem:[%s0 + $0x68] sm:$0xff]
    %v44 = vld [vmem:[%s0 + $0x70] sm:$0xff]
    %v45 = vld [vmem:[%s0 + $0x78] sm:$0xff]
    %v46 = vld [vmem:[%s0 + $0x80] sm:$0xff]
    %v47 = vld [vmem:[%s0 + $0x88] sm:$0xff]
    %v48 = vld [vmem:[%s0 + $0x90] sm:$0xff]
    %v49 = vld [vmem:[%s0 + $0x98] sm:$0xff]
    %v50 = vld [vmem:[%s0 + $0xa0] sm:$0xff]
    %v51 = vld [vmem:[%s0 + $0xa8] sm:$0xff]
    %v52 = vld [vmem:[%s0 + $0xb0] sm:$0xff]
    %v53 = vld [vmem:[%s0 + $0xb8] sm:$0xff]
    %v54 = vld [vmem:[%s0 + $0xc0] sm:$0xff]
    %v55 = vld [vmem:[%s0 + $0xc8] sm:$0xff]
    %v56 = vld [vmem:[%s0 + $0xd0] sm:$0xff]
    %v57 = vld [vmem:[%s0 + $0xd8] sm:$0xff]
    %v58 = vld [vmem:[%s0 + $0xe0] sm:$0xff]
    %v59 = vld [vmem:[%s0 + $0xe8] sm:$0xff]
    %v60 = vld [vmem:[%s0 + $0xf0] sm:$0xff]
    %v61 = vld [vmem:[%s0 + $0xf8] sm:$0xff]
    %v62 = vld [vmem:[%s4] sm:$0xff]
    %v63 = vld [vmem:[%s4 + $0x8] sm:$0xff]
    %v64 = vld [vmem:[%s5] sm:$0x3]
    %v66 = vlaneseq
    %v67 = vshrl.u32 %v66, 7
    %v68 = vsub.s32 0, %v67
    %v69 = vrot.slane %v64, %v68
    %v70 = vlaneseq
    %v71 = vshrl.u32 %v70, 7
    %v72 = vsub.s32 1, %v71
    %v73 = vrot.slane %v64, %v72
    %vm76 = vcmask 64512
    %v78 = vsel %vm76, %v30, 0
    %v81 = vsel %vm76, %v31, 0
    %v84 = vsel %vm76, %v32, 0
    %v87 = vsel %vm76, %v33, 0
    %v90 = vsel %vm76, %v34, 0
    %v93 = vsel %vm76, %v35, 0
    %v96 = vsel %vm76, %v36, 0
    %v99 = vsel %vm76, %v37, 0
    %v102 = vsel %vm76, %v38, 0
    %v105 = vsel %vm76, %v39, 0
    %v108 = vsel %vm76, %v40, 0
    %v111 = vsel %vm76, %v41, 0
    %v114 = vsel %vm76, %v42, 0
    %v117 = vsel %vm76, %v43, 0
    %v120 = vsel %vm76, %v44, 0
    %v123 = vsel %vm76, %v45, 0
    %v126 = vsel %vm76, %v46, 0
    %v129 = vsel %vm76, %v47, 0
    %v132 = vsel %vm76, %v48, 0
    %v135 = vsel %vm76, %v49, 0
    %v138 = vsel %vm76, %v50, 0
    %v141 = vsel %vm76, %v51, 0
    %v144 = vsel %vm76, %v52, 0
    %v147 = vsel %vm76, %v53, 0
    %v150 = vsel %vm76, %v54, 0
    %v153 = vsel %vm76, %v55, 0
    %v156 = vsel %vm76, %v56, 0
    %v159 = vsel %vm76, %v57, 0
    %v162 = vsel %vm76, %v58, 0
    %v165 = vsel %vm76, %v59, 0
    %v168 = vsel %vm76, %v60, 0
    %v171 = vsel %vm76, %v61, 0
    %173 = vmatprep.subr.mxu0 0.0
    %174 = vmatpush1.msra.mxu0 0.0
    %175 = vmatprep.subr.mxu0 0.0
    %176 = vmatpush1.msra.mxu0 0.0
    %177 = vmatprep.subr.mxu0 0.0
    %178 = vmatpush1.msra.mxu0 0.0
    %179 = vmatprep.subr.mxu0 0.0
    %180 = vmatpush1.msra.mxu0 0.0
    %181 = vmatprep.subr.mxu0 0.0
    %182 = vmatpush1.msra.mxu0 0.0
    %183 = vmatprep.subr.mxu0 0.0
    %184 = vmatpush1.msra.mxu0 0.0
    %185 = vmatprep.subr.mxu0 0.0
    %186 = vmatpush1.msra.mxu0 0.0
    %187 = vmatprep.subr.mxu0 0.0
    %188 = vmatpush1.msra.mxu0 0.0
    %189 = vmatprep.subr.mxu0 0.0
    %190 = vmatpush1.msra.mxu0 0.0
    %191 = vmatprep.subr.mxu0 0.0
    %192 = vmatpush1.msra.mxu0 0.0
    %193 = vmatprep.subr.mxu0 0.0
    %194 = vmatpush1.msra.mxu0 0.0
    %195 = vmatprep.subr.mxu0 0.0
    %196 = vmatpush1.msra.mxu0 0.0
    %197 = vmatprep.subr.mxu0 0.0
    %198 = vmatpush1.msra.mxu0 0.0
    %199 = vmatprep.subr.mxu0 0.0
    %200 = vmatpush1.msra.mxu0 0.0
    %201 = vmatprep.subr.mxu0 0.0
    %202 = vmatpush1.msra.mxu0 0.0
    %203 = vmatprep.subr.mxu0 %v63
    %204 = vmatpush1.msra.mxu0 %v62
    %205 = vmatprep.subr.mxu0 0.0
    %206 = vmatpush2.msra.mxu0 0.0
    %207 = vmatprep.subr.mxu0 0.0
    %208 = vmatpush2.msra.mxu0 0.0
    %209 = vmatprep.subr.mxu0 0.0
    %210 = vmatpush2.msra.mxu0 0.0
    %211 = vmatprep.subr.mxu0 0.0
    %212 = vmatpush2.msra.mxu0 0.0
    %213 = vmatprep.subr.mxu0 0.0
    %214 = vmatpush2.msra.mxu0 0.0
    %215 = vmatprep.subr.mxu0 0.0
    %216 = vmatpush2.msra.mxu0 0.0
    %217 = vmatprep.subr.mxu0 0.0
    %218 = vmatpush2.msra.mxu0 0.0
    %219 = vmatprep.subr.mxu0 0.0
    %220 = vmatpush2.msra.mxu0 0.0
    %221 = vmatprep.subr.mxu0 0.0
    %222 = vmatpush2.msra.mxu0 0.0
    %223 = vmatprep.subr.mxu0 0.0
    %224 = vmatpush2.msra.mxu0 0.0
    %225 = vmatprep.subr.mxu0 0.0
    %226 = vmatpush2.msra.mxu0 0.0
    %227 = vmatprep.subr.mxu0 0.0
    %228 = vmatpush2.msra.mxu0 0.0
    %229 = vmatprep.subr.mxu0 0.0
    %230 = vmatpush2.msra.mxu0 0.0
    %231 = vmatprep.subr.mxu0 0.0
    %232 = vmatpush2.msra.mxu0 0.0
    %233 = vmatprep.subr.mxu0 0.0
    %234 = vmatpush2.msra.mxu0 0.0
    %235 = vmatprep.subr.mxu0 0.0
    %236 = vmatpush2.msra.mxu0 0.0
    %237 = vmatprep.mubr.f32.mxu0 0.0
    %238 = vmatmul.mubr.f32.gmra.mxu0 %v78
    %v239 = vpop.f32.mrf.mxu0
    %v240 = vadd.f32 %v69, %v239
    %v241 = vpop.f32.mrf.mxu0
    %v242 = vadd.f32 %v73, %v241
    %243 = vmatprep.mubr.f32.mxu0 0.0
    %244 = vmatmul.mubr.f32.gmra.mxu0 %v81
    %v245 = vpop.f32.mrf.mxu0
    %v246 = vadd.f32 %v69, %v245
    %v247 = vpop.f32.mrf.mxu0
    %v248 = vadd.f32 %v73, %v247
    %249 = vmatprep.mubr.f32.mxu0 0.0
    %250 = vmatmul.mubr.f32.gmra.mxu0 %v84
    %v251 = vpop.f32.mrf.mxu0
    %v252 = vadd.f32 %v69, %v251
    %v253 = vpop.f32.mrf.mxu0
    %v254 = vadd.f32 %v73, %v253
    %255 = vmatprep.mubr.f32.mxu0 0.0
    %256 = vmatmul.mubr.f32.gmra.mxu0 %v87
    %v257 = vpop.f32.mrf.mxu0
    %v258 = vadd.f32 %v69, %v257
    %v259 = vpop.f32.mrf.mxu0
    %v260 = vadd.f32 %v73, %v259
    %261 = vmatprep.mubr.f32.mxu0 0.0
    %262 = vmatmul.mubr.f32.gmra.mxu0 %v90
    %v263 = vpop.f32.mrf.mxu0
    %v264 = vadd.f32 %v69, %v263
    %v265 = vpop.f32.mrf.mxu0
    %v266 = vadd.f32 %v73, %v265
    %267 = vmatprep.mubr.f32.mxu0 0.0
    %268 = vmatmul.mubr.f32.gmra.mxu0 %v93
    %v269 = vpop.f32.mrf.mxu0
    %v270 = vadd.f32 %v69, %v269
    %v271 = vpop.f32.mrf.mxu0
    %v272 = vadd.f32 %v73, %v271
    %273 = vmatprep.mubr.f32.mxu0 0.0
    %274 = vmatmul.mubr.f32.gmra.mxu0 %v96
    %v275 = vpop.f32.mrf.mxu0
    %v276 = vadd.f32 %v69, %v275
    %v277 = vpop.f32.mrf.mxu0
    %v278 = vadd.f32 %v73, %v277
    %279 = vmatprep.mubr.f32.mxu0 0.0
    %280 = vmatmul.mubr.f32.gmra.mxu0 %v99
    %v281 = vpop.f32.mrf.mxu0
    %v282 = vadd.f32 %v69, %v281
    %v283 = vpop.f32.mrf.mxu0
    %v284 = vadd.f32 %v73, %v283
    %285 = vmatprep.mubr.f32.mxu0 0.0
    %286 = vmatmul.mubr.f32.gmra.mxu0 %v102
    %v287 = vpop.f32.mrf.mxu0
    %v288 = vadd.f32 %v69, %v287
    %v289 = vpop.f32.mrf.mxu0
    %v290 = vadd.f32 %v73, %v289
    %291 = vmatprep.mubr.f32.mxu0 0.0
    %292 = vmatmul.mubr.f32.gmra.mxu0 %v105
    %v293 = vpop.f32.mrf.mxu0
    %v294 = vadd.f32 %v69, %v293
    %v295 = vpop.f32.mrf.mxu0
    %v296 = vadd.f32 %v73, %v295
    %297 = vmatprep.mubr.f32.mxu0 0.0
    %298 = vmatmul.mubr.f32.gmra.mxu0 %v108
    %v299 = vpop.f32.mrf.mxu0
    %v300 = vadd.f32 %v69, %v299
    %v301 = vpop.f32.mrf.mxu0
    %v302 = vadd.f32 %v73, %v301
    %303 = vmatprep.mubr.f32.mxu0 0.0
    %304 = vmatmul.mubr.f32.gmra.mxu0 %v111
    %v305 = vpop.f32.mrf.mxu0
    %v306 = vadd.f32 %v69, %v305
    %v307 = vpop.f32.mrf.mxu0
    %v308 = vadd.f32 %v73, %v307
    %309 = vmatprep.mubr.f32.mxu0 0.0
    %310 = vmatmul.mubr.f32.gmra.mxu0 %v114
    %v311 = vpop.f32.mrf.mxu0
    %v312 = vadd.f32 %v69, %v311
    %v313 = vpop.f32.mrf.mxu0
    %v314 = vadd.f32 %v73, %v313
    %315 = vmatprep.mubr.f32.mxu0 0.0
    %316 = vmatmul.mubr.f32.gmra.mxu0 %v117
    %v317 = vpop.f32.mrf.mxu0
    %v318 = vadd.f32 %v69, %v317
    %v319 = vpop.f32.mrf.mxu0
    %v320 = vadd.f32 %v73, %v319
    %321 = vmatprep.mubr.f32.mxu0 0.0
    %322 = vmatmul.mubr.f32.gmra.mxu0 %v120
    %v323 = vpop.f32.mrf.mxu0
    %v324 = vadd.f32 %v69, %v323
    %v325 = vpop.f32.mrf.mxu0
    %v326 = vadd.f32 %v73, %v325
    %327 = vmatprep.mubr.f32.mxu0 0.0
    %328 = vmatmul.mubr.f32.gmra.mxu0 %v123
    %v329 = vpop.f32.mrf.mxu0
    %v330 = vadd.f32 %v69, %v329
    %v331 = vpop.f32.mrf.mxu0
    %v332 = vadd.f32 %v73, %v331
    %333 = vmatprep.mubr.f32.mxu0 0.0
    %334 = vmatmul.mubr.f32.gmra.mxu0 %v126
    %v335 = vpop.f32.mrf.mxu0
    %v336 = vadd.f32 %v69, %v335
    %v337 = vpop.f32.mrf.mxu0
    %v338 = vadd.f32 %v73, %v337
    %339 = vmatprep.mubr.f32.mxu0 0.0
    %340 = vmatmul.mubr.f32.gmra.mxu0 %v129
    %v341 = vpop.f32.mrf.mxu0
    %v342 = vadd.f32 %v69, %v341
    %v343 = vpop.f32.mrf.mxu0
    %v344 = vadd.f32 %v73, %v343
    %345 = vmatprep.mubr.f32.mxu0 0.0
    %346 = vmatmul.mubr.f32.gmra.mxu0 %v132
    %v347 = vpop.f32.mrf.mxu0
    %v348 = vadd.f32 %v69, %v347
    %v349 = vpop.f32.mrf.mxu0
    %v350 = vadd.f32 %v73, %v349
    %351 = vmatprep.mubr.f32.mxu0 0.0
    %352 = vmatmul.mubr.f32.gmra.mxu0 %v135
    %v353 = vpop.f32.mrf.mxu0
    %v354 = vadd.f32 %v69, %v353
    %v355 = vpop.f32.mrf.mxu0
    %v356 = vadd.f32 %v73, %v355
    %357 = vmatprep.mubr.f32.mxu0 0.0
    %358 = vmatmul.mubr.f32.gmra.mxu0 %v138
    %v359 = vpop.f32.mrf.mxu0
    %v360 = vadd.f32 %v69, %v359
    %v361 = vpop.f32.mrf.mxu0
    %v362 = vadd.f32 %v73, %v361
    %363 = vmatprep.mubr.f32.mxu0 0.0
    %364 = vmatmul.mubr.f32.gmra.mxu0 %v141
    %v365 = vpop.f32.mrf.mxu0
    %v366 = vadd.f32 %v69, %v365
    %v367 = vpop.f32.mrf.mxu0
    %v368 = vadd.f32 %v73, %v367
    %369 = vmatprep.mubr.f32.mxu0 0.0
    %370 = vmatmul.mubr.f32.gmra.mxu0 %v144
    %v371 = vpop.f32.mrf.mxu0
    %v372 = vadd.f32 %v69, %v371
    %v373 = vpop.f32.mrf.mxu0
    %v374 = vadd.f32 %v73, %v373
    %375 = vmatprep.mubr.f32.mxu0 0.0
    %376 = vmatmul.mubr.f32.gmra.mxu0 %v147
    %v377 = vpop.f32.mrf.mxu0
    %v378 = vadd.f32 %v69, %v377
    %v379 = vpop.f32.mrf.mxu0
    %v380 = vadd.f32 %v73, %v379
    %381 = vmatprep.mubr.f32.mxu0 0.0
    %382 = vmatmul.mubr.f32.gmra.mxu0 %v150
    %v383 = vpop.f32.mrf.mxu0
    %v384 = vadd.f32 %v69, %v383
    %v385 = vpop.f32.mrf.mxu0
    %v386 = vadd.f32 %v73, %v385
    %387 = vmatprep.mubr.f32.mxu0 0.0
    %388 = vmatmul.mubr.f32.gmra.mxu0 %v153
    %v389 = vpop.f32.mrf.mxu0
    %v390 = vadd.f32 %v69, %v389
    %v391 = vpop.f32.mrf.mxu0
    %v392 = vadd.f32 %v73, %v391
    %393 = vmatprep.mubr.f32.mxu0 0.0
    %394 = vmatmul.mubr.f32.gmra.mxu0 %v156
    %v395 = vpop.f32.mrf.mxu0
    %v396 = vadd.f32 %v69, %v395
    %v397 = vpop.f32.mrf.mxu0
    %v398 = vadd.f32 %v73, %v397
    %399 = vmatprep.mubr.f32.mxu0 0.0
    %400 = vmatmul.mubr.f32.gmra.mxu0 %v159
    %v401 = vpop.f32.mrf.mxu0
    %v402 = vadd.f32 %v69, %v401
    %v403 = vpop.f32.mrf.mxu0
    %v404 = vadd.f32 %v73, %v403
    %405 = vmatprep.mubr.f32.mxu0 0.0
    %406 = vmatmul.mubr.f32.gmra.mxu0 %v162
    %v407 = vpop.f32.mrf.mxu0
    %v408 = vadd.f32 %v69, %v407
    %v409 = vpop.f32.mrf.mxu0
    %v410 = vadd.f32 %v73, %v409
    %411 = vmatprep.mubr.f32.mxu0 0.0
    %412 = vmatmul.mubr.f32.gmra.mxu0 %v165
    %v413 = vpop.f32.mrf.mxu0
    %v414 = vadd.f32 %v69, %v413
    %v415 = vpop.f32.mrf.mxu0
    %v416 = vadd.f32 %v73, %v415
    %417 = vmatprep.mubr.f32.mxu0 0.0
    %418 = vmatmul.mubr.f32.gmra.mxu0 %v168
    %v419 = vpop.f32.mrf.mxu0
    %v420 = vadd.f32 %v69, %v419
    %v421 = vpop.f32.mrf.mxu0
    %v422 = vadd.f32 %v73, %v421
    %423 = vmatprep.mubr.f32.mxu0 0.0
    %424 = vmatmul.mubr.f32.gmra.mxu0 %v171
    %v425 = vpop.f32.mrf.mxu0
    %v426 = vadd.f32 %v69, %v425
    %v427 = vpop.f32.mrf.mxu0
    %v428 = vadd.f32 %v73, %v427
    %429 = vdwg.mxu0
    %v430 = vmax.f32 %v240, 0.0
    %v431 = vmax.f32 %v242, 0.0
    %v432 = vmax.f32 %v246, 0.0
    %v433 = vmax.f32 %v248, 0.0
    %v434 = vmax.f32 %v252, 0.0
    %v435 = vmax.f32 %v254, 0.0
    %v436 = vmax.f32 %v258, 0.0
    %v437 = vmax.f32 %v260, 0.0
    %v438 = vmax.f32 %v264, 0.0
    %v439 = vmax.f32 %v266, 0.0
    %v440 = vmax.f32 %v270, 0.0
    %v441 = vmax.f32 %v272, 0.0
    %v442 = vmax.f32 %v276, 0.0
    %v443 = vmax.f32 %v278, 0.0
    %v444 = vmax.f32 %v282, 0.0
    %v445 = vmax.f32 %v284, 0.0
    %v446 = vmax.f32 %v288, 0.0
    %v447 = vmax.f32 %v290, 0.0
    %v448 = vmax.f32 %v294, 0.0
    %v449 = vmax.f32 %v296, 0.0
    %v450 = vmax.f32 %v300, 0.0
    %v451 = vmax.f32 %v302, 0.0
    %v452 = vmax.f32 %v306, 0.0
    %v453 = vmax.f32 %v308, 0.0
    %v454 = vmax.f32 %v312, 0.0
    %v455 = vmax.f32 %v314, 0.0
    %v456 = vmax.f32 %v318, 0.0
    %v457 = vmax.f32 %v320, 0.0
    %v458 = vmax.f32 %v324, 0.0
    %v459 = vmax.f32 %v326, 0.0
    %v460 = vmax.f32 %v330, 0.0
    %v461 = vmax.f32 %v332, 0.0
    %v462 = vmax.f32 %v336, 0.0
    %v463 = vmax.f32 %v338, 0.0
    %v464 = vmax.f32 %v342, 0.0
    %v465 = vmax.f32 %v344, 0.0
    %v466 = vmax.f32 %v348, 0.0
    %v467 = vmax.f32 %v350, 0.0
    %v468 = vmax.f32 %v354, 0.0
    %v469 = vmax.f32 %v356, 0.0
    %v470 = vmax.f32 %v360, 0.0
    %v471 = vmax.f32 %v362, 0.0
    %v472 = vmax.f32 %v366, 0.0
    %v473 = vmax.f32 %v368, 0.0
    %v474 = vmax.f32 %v372, 0.0
    %v475 = vmax.f32 %v374, 0.0
    %v476 = vmax.f32 %v378, 0.0
    %v477 = vmax.f32 %v380, 0.0
    %v478 = vmax.f32 %v384, 0.0
    %v479 = vmax.f32 %v386, 0.0
    %v480 = vmax.f32 %v390, 0.0
    %v481 = vmax.f32 %v392, 0.0
    %v482 = vmax.f32 %v396, 0.0
    %v483 = vmax.f32 %v398, 0.0
    %v484 = vmax.f32 %v402, 0.0
    %v485 = vmax.f32 %v404, 0.0
    %v486 = vmax.f32 %v408, 0.0
    %v487 = vmax.f32 %v410, 0.0
    %v488 = vmax.f32 %v414, 0.0
    %v489 = vmax.f32 %v416, 0.0
    %v490 = vmax.f32 %v420, 0.0
    %v491 = vmax.f32 %v422, 0.0
    %v492 = vmax.f32 %v426, 0.0
    %v493 = vmax.f32 %v428, 0.0
    %v494 = vld [vmem:[%s1] sm:$0xff]
    %v495 = vld [vmem:[%s1 + $0x8] sm:$0xff]
    %496 = vmatprep.subr.mxu0 %v461
    %497 = vmatpush1.msra.mxu0 %v460
    %498 = vmatprep.subr.mxu0 %v459
    %499 = vmatpush1.msra.mxu0 %v458
    %500 = vmatprep.subr.mxu0 %v457
    %501 = vmatpush1.msra.mxu0 %v456
    %502 = vmatprep.subr.mxu0 %v455
    %503 = vmatpush1.msra.mxu0 %v454
    %504 = vmatprep.subr.mxu0 %v453
    %505 = vmatpush1.msra.mxu0 %v452
    %506 = vmatprep.subr.mxu0 %v451
    %507 = vmatpush1.msra.mxu0 %v450
    %508 = vmatprep.subr.mxu0 %v449
    %509 = vmatpush1.msra.mxu0 %v448
    %510 = vmatprep.subr.mxu0 %v447
    %511 = vmatpush1.msra.mxu0 %v446
    %512 = vmatprep.subr.mxu0 %v445
    %513 = vmatpush1.msra.mxu0 %v444
    %514 = vmatprep.subr.mxu0 %v443
    %515 = vmatpush1.msra.mxu0 %v442
    %516 = vmatprep.subr.mxu0 %v441
    %517 = vmatpush1.msra.mxu0 %v440
    %518 = vmatprep.subr.mxu0 %v439
    %519 = vmatpush1.msra.mxu0 %v438
    %520 = vmatprep.subr.mxu0 %v437
    %521 = vmatpush1.msra.mxu0 %v436
    %522 = vmatprep.subr.mxu0 %v435
    %523 = vmatpush1.msra.mxu0 %v434
    %524 = vmatprep.subr.mxu0 %v433
    %525 = vmatpush1.msra.mxu0 %v432
    %526 = vmatprep.subr.mxu0 %v431
    %527 = vmatpush1.msra.mxu0 %v430
    %528 = vmatprep.subr.mxu0 %v493
    %529 = vmatpush2.msra.mxu0 %v492
    %530 = vmatprep.subr.mxu0 %v491
    %531 = vmatpush2.msra.mxu0 %v490
    %532 = vmatprep.subr.mxu0 %v489
    %533 = vmatpush2.msra.mxu0 %v488
    %534 = vmatprep.subr.mxu0 %v487
    %535 = vmatpush2.msra.mxu0 %v486
    %536 = vmatprep.subr.mxu0 %v485
    %537 = vmatpush2.msra.mxu0 %v484
    %538 = vmatprep.subr.mxu0 %v483
    %539 = vmatpush2.msra.mxu0 %v482
    %540 = vmatprep.subr.mxu0 %v481
    %541 = vmatpush2.msra.mxu0 %v480
    %542 = vmatprep.subr.mxu0 %v479
    %543 = vmatpush2.msra.mxu0 %v478
    %544 = vmatprep.subr.mxu0 %v477
    %545 = vmatpush2.msra.mxu0 %v476
    %546 = vmatprep.subr.mxu0 %v475
    %547 = vmatpush2.msra.mxu0 %v474
    %548 = vmatprep.subr.mxu0 %v473
    %549 = vmatpush2.msra.mxu0 %v472
    %550 = vmatprep.subr.mxu0 %v471
    %551 = vmatpush2.msra.mxu0 %v470
    %552 = vmatprep.subr.mxu0 %v469
    %553 = vmatpush2.msra.mxu0 %v468
    %554 = vmatprep.subr.mxu0 %v467
    %555 = vmatpush2.msra.mxu0 %v466
    %556 = vmatprep.subr.mxu0 %v465
    %557 = vmatpush2.msra.mxu0 %v464
    %558 = vmatprep.subr.mxu0 %v463
    %559 = vmatpush2.msra.mxu0 %v462
    %560 = vmatprep.mubr.f32.mxu0 %v495
    %561 = vmatmul.mubr.f32.gmra.mxu0 %v494
    %v562 = vpop.f32.mrf.mxu0
    %v563 = vadd.f32 0.0, %v562
    %v564 = vpop.f32.mrf.mxu0
    %v565 = vadd.f32 0.0, %v564
    %566 = vdwg.mxu0
    %v567 = vld [vmem:[%s3] sm:$0xff]
    %v568 = vld [vmem:[%s3 + $0x8] sm:$0xff]
    %v569 = vmul.f32 %v567, %v563
    %v570 = vmul.f32 %v568, %v565
    %v571 = vld [vmem:[%s6] sm:$0xff]
    %v572 = vld [vmem:[%s6 + $0x8] sm:$0xff]
    %v573 = vld [vmem:[%s6 + $0x10] sm:$0xff]
    %v574 = vld [vmem:[%s6 + $0x18] sm:$0xff]
    %v575 = vld [vmem:[%s6 + $0x20] sm:$0xff]
    %v576 = vld [vmem:[%s6 + $0x28] sm:$0xff]
    %v577 = vld [vmem:[%s6 + $0x30] sm:$0xff]
    %v578 = vld [vmem:[%s6 + $0x38] sm:$0xff]
    %v579 = vld [vmem:[%s6 + $0x40] sm:$0xff]
    %v580 = vld [vmem:[%s6 + $0x48] sm:$0xff]
    %v581 = vld [vmem:[%s6 + $0x50] sm:$0xff]
    %v582 = vld [vmem:[%s6 + $0x58] sm:$0xff]
    %v583 = vld [vmem:[%s6 + $0x60] sm:$0xff]
    %v584 = vld [vmem:[%s6 + $0x68] sm:$0xff]
    %v585 = vld [vmem:[%s6 + $0x70] sm:$0xff]
    %v586 = vld [vmem:[%s6 + $0x78] sm:$0xff]
    %v587 = vld [vmem:[%s6 + $0x80] sm:$0xff]
    %v588 = vld [vmem:[%s6 + $0x88] sm:$0xff]
    %v589 = vld [vmem:[%s6 + $0x90] sm:$0xff]
    %v590 = vld [vmem:[%s6 + $0x98] sm:$0xff]
    %v591 = vld [vmem:[%s6 + $0xa0] sm:$0xff]
    %v592 = vld [vmem:[%s6 + $0xa8] sm:$0xff]
    %v593 = vld [vmem:[%s6 + $0xb0] sm:$0xff]
    %v594 = vld [vmem:[%s6 + $0xb8] sm:$0xff]
    %v595 = vld [vmem:[%s6 + $0xc0] sm:$0xff]
    %v596 = vld [vmem:[%s6 + $0xc8] sm:$0xff]
    %v597 = vld [vmem:[%s6 + $0xd0] sm:$0xff]
    %v598 = vld [vmem:[%s6 + $0xd8] sm:$0xff]
    %v599 = vld [vmem:[%s6 + $0xe0] sm:$0xff]
    %v600 = vld [vmem:[%s6 + $0xe8] sm:$0xff]
    %v601 = vld [vmem:[%s6 + $0xf0] sm:$0xff]
    %v602 = vld [vmem:[%s6 + $0xf8] sm:$0xff]
    %v603 = vld [vmem:[%s2] sm:$0xff]
    %v604 = vld [vmem:[%s7] sm:$0xff]
    %v606 = vsel %vm76, %v603, 0
    %608 = vmatprep.subr.mxu0 0.0
    %609 = vmatpush1.msra.mxu0 0.0
    %610 = vmatprep.subr.mxu0 0.0
    %611 = vmatpush1.msra.mxu0 0.0
    %612 = vmatprep.subr.mxu0 0.0
    %613 = vmatpush1.msra.mxu0 0.0
    %614 = vmatprep.subr.mxu0 0.0
    %615 = vmatpush1.msra.mxu0 0.0
    %616 = vmatprep.subr.mxu0 0.0
    %617 = vmatpush1.msra.mxu0 0.0
    %618 = vmatprep.subr.mxu0 0.0
    %619 = vmatpush1.msra.mxu0 0.0
    %620 = vmatprep.subr.mxu0 0.0
    %621 = vmatpush1.msra.mxu0 0.0
    %622 = vmatprep.subr.mxu0 0.0
    %623 = vmatpush1.msra.mxu0 0.0
    %624 = vmatprep.subr.mxu0 0.0
    %625 = vmatpush1.msra.mxu0 0.0
    %626 = vmatprep.subr.mxu0 0.0
    %627 = vmatpush1.msra.mxu0 0.0
    %628 = vmatprep.subr.mxu0 0.0
    %629 = vmatpush1.msra.mxu0 0.0
    %630 = vmatprep.subr.mxu0 0.0
    %631 = vmatpush1.msra.mxu0 0.0
    %632 = vmatprep.subr.mxu0 0.0
    %633 = vmatpush1.msra.mxu0 0.0
    %634 = vmatprep.subr.mxu0 0.0
    %635 = vmatpush1.msra.mxu0 0.0
    %636 = vmatprep.subr.mxu0 0.0
    %637 = vmatpush1.msra.mxu0 0.0
    %638 = vmatprep.subr.mxu0 0.0
    %639 = vmatpush1.msra.mxu0 %v604
    %640 = vmatprep.subr.mxu0 0.0
    %641 = vmatpush2.msra.mxu0 0.0
    %642 = vmatprep.subr.mxu0 0.0
    %643 = vmatpush2.msra.mxu0 0.0
    %644 = vmatprep.subr.mxu0 0.0
    %645 = vmatpush2.msra.mxu0 0.0
    %646 = vmatprep.subr.mxu0 0.0
    %647 = vmatpush2.msra.mxu0 0.0
    %648 = vmatprep.subr.mxu0 0.0
    %649 = vmatpush2.msra.mxu0 0.0
    %650 = vmatprep.subr.mxu0 0.0
    %651 = vmatpush2.msra.mxu0 0.0
    %652 = vmatprep.subr.mxu0 0.0
    %653 = vmatpush2.msra.mxu0 0.0
    %654 = vmatprep.subr.mxu0 0.0
    %655 = vmatpush2.msra.mxu0 0.0
    %656 = vmatprep.subr.mxu0 0.0
    %657 = vmatpush2.msra.mxu0 0.0
    %658 = vmatprep.subr.mxu0 0.0
    %659 = vmatpush2.msra.mxu0 0.0
    %660 = vmatprep.subr.mxu0 0.0
    %661 = vmatpush2.msra.mxu0 0.0
    %662 = vmatprep.subr.mxu0 0.0
    %663 = vmatpush2.msra.mxu0 0.0
    %664 = vmatprep.subr.mxu0 0.0
    %665 = vmatpush2.msra.mxu0 0.0
    %666 = vmatprep.subr.mxu0 0.0
    %667 = vmatpush2.msra.mxu0 0.0
    %668 = vmatprep.subr.mxu0 0.0
    %669 = vmatpush2.msra.mxu0 0.0
    %670 = vmatprep.subr.mxu0 0.0
    %671 = vmatpush2.msra.mxu0 0.0
    %672 = vmatprep.mubr.f32.mxu0 0.0
    %673 = vmatmul.mubr.f32.gmra.mxu0 %v606
    %v674 = vpop.f32.mrf.mxu0
    %v675 = vadd.f32 0.0, %v674
    %v676 = vpop.f32.mrf.mxu0
    %677 = vdwg.mxu0
    %678 = vmatprep.subr.mxu0 0.0
    %679 = vmatpush1.msra.mxu0 %v586
    %680 = vmatprep.subr.mxu0 0.0
    %681 = vmatpush1.msra.mxu0 %v585
    %682 = vmatprep.subr.mxu0 0.0
    %683 = vmatpush1.msra.mxu0 %v584
    %684 = vmatprep.subr.mxu0 0.0
    %685 = vmatpush1.msra.mxu0 %v583
    %686 = vmatprep.subr.mxu0 0.0
    %687 = vmatpush1.msra.mxu0 %v582
    %688 = vmatprep.subr.mxu0 0.0
    %689 = vmatpush1.msra.mxu0 %v581
    %690 = vmatprep.subr.mxu0 0.0
    %691 = vmatpush1.msra.mxu0 %v580
    %692 = vmatprep.subr.mxu0 0.0
    %693 = vmatpush1.msra.mxu0 %v579
    %694 = vmatprep.subr.mxu0 0.0
    %695 = vmatpush1.msra.mxu0 %v578
    %696 = vmatprep.subr.mxu0 0.0
    %697 = vmatpush1.msra.mxu0 %v577
    %698 = vmatprep.subr.mxu0 0.0
    %699 = vmatpush1.msra.mxu0 %v576
    %700 = vmatprep.subr.mxu0 0.0
    %701 = vmatpush1.msra.mxu0 %v575
    %702 = vmatprep.subr.mxu0 0.0
    %703 = vmatpush1.msra.mxu0 %v574
    %704 = vmatprep.subr.mxu0 0.0
    %705 = vmatpush1.msra.mxu0 %v573
    %706 = vmatprep.subr.mxu0 0.0
    %707 = vmatpush1.msra.mxu0 %v572
    %708 = vmatprep.subr.mxu0 0.0
    %709 = vmatpush1.msra.mxu0 %v571
    %710 = vmatprep.subr.mxu0 0.0
    %711 = vmatpush2.msra.mxu0 %v602
    %712 = vmatprep.subr.mxu0 0.0
    %713 = vmatpush2.msra.mxu0 %v601
    %714 = vmatprep.subr.mxu0 0.0
    %715 = vmatpush2.msra.mxu0 %v600
    %716 = vmatprep.subr.mxu0 0.0
    %717 = vmatpush2.msra.mxu0 %v599
    %718 = vmatprep.subr.mxu0 0.0
    %719 = vmatpush2.msra.mxu0 %v598
    %720 = vmatprep.subr.mxu0 0.0
    %721 = vmatpush2.msra.mxu0 %v597
    %722 = vmatprep.subr.mxu0 0.0
    %723 = vmatpush2.msra.mxu0 %v596
    %724 = vmatprep.subr.mxu0 0.0
    %725 = vmatpush2.msra.mxu0 %v595
    %726 = vmatprep.subr.mxu0 0.0
    %727 = vmatpush2.msra.mxu0 %v594
    %728 = vmatprep.subr.mxu0 0.0
    %729 = vmatpush2.msra.mxu0 %v593
    %730 = vmatprep.subr.mxu0 0.0
    %731 = vmatpush2.msra.mxu0 %v592
    %732 = vmatprep.subr.mxu0 0.0
    %733 = vmatpush2.msra.mxu0 %v591
    %734 = vmatprep.subr.mxu0 0.0
    %735 = vmatpush2.msra.mxu0 %v590
    %736 = vmatprep.subr.mxu0 0.0
    %737 = vmatpush2.msra.mxu0 %v589
    %738 = vmatprep.subr.mxu0 0.0
    %739 = vmatpush2.msra.mxu0 %v588
    %740 = vmatprep.subr.mxu0 0.0
    %741 = vmatpush2.msra.mxu0 %v587
    %742 = vmatprep.mubr.f32.mxu0 %v570
    %743 = vmatmul.mubr.f32.gmra.mxu0 %v569
    %v744 = vpop.f32.mrf.mxu0
    %v745 = vadd.f32 %v675, %v744
    %v746 = vpop.f32.mrf.mxu0
    %747 = vdwg.mxu0
    %748 = vst.msk [vmem:[#allocation2] sm:$0xff] %vm76, %v745
    // Predicated region
    $region34: #{moe_forward.1} parent=1 // pred_check
      _
    $region35: #{moe_forward.1} parent=1 // pred_check_branch
      %750 = sbr.rel (0) target = $region37
    $region36: #{moe_forward.1} parent=1 // pred_region
      %s752 = ssub.s32 128, 128
      %753 = vsyncadd [#allocation3], %s752
      %s755 = sshll.u32 [#allocation2], 4
      %s756 = int_to_ptr.vmem [resolvable:$true] %s755
      %758 = dma.vmem_to_hbm [thread:$0]  %s756, 128, %s8, [#allocation3]
    $region37: #{moe_forward.1} parent=1 // pred_fallthru
      _
    // Predicated region
    $region38: #{moe_forward.1} parent=1 // pred_check
      _
    $region39: #{moe_forward.1} parent=1 // pred_check_branch
      %760 = sbr.rel (0) target = $region41
    $region40: #{moe_forward.1} parent=1 // pred_region
      %761 = dma.done [#allocation3], 128
    $region41: #{moe_forward.1} parent=1 // pred_fallthru
      _
    %762 = vsyncpa [#allocation3], 1

</llo_original>
